<compile_context>
chip_gen: v7x
topology: tpu7x:2x2x1
jax: 0.10.0
libtpu: 0.0.40
codegen_flags: <defaults>
</compile_context>

<pallas_src>
import math
from functools import partial

import jax
import jax.numpy as jnp
from jax.experimental import pallas as pl
from jax.experimental.pallas import tpu as pltpu


def _spatial_graph_kernel(xm_ref, w_ref, o_ref, *, d_model, compute_dtype,
                          approx_recip):
    # xm_ref: (N, C)      hoisted mean over (B, T)
    # w_ref : (K, C, 2C)  all K weight slabs (batched, no K grid)
    # o_ref : (K, N, N)   softmaxed scores for every pattern
    K, C, _ = w_ref.shape
    N = xm_ref.shape[0]

    xm = xm_ref[...].astype(compute_dtype)                     # (N, C)
    w = w_ref[...].astype(compute_dtype)                       # (K, C, 2C)

    # Fused q/k projection, batched over K on the MXU:
    # (K, N, C) x (K, C, 2C) -> (K, N, 2C), f32 accumulation.
    xb = jnp.broadcast_to(xm[None], (K, N, C))
    qk = jnp.einsum("knc,kcd->knd", xb, w,
                    preferred_element_type=jnp.float32)        # (K, N, 2C)

    q = qk[:, :, :d_model].astype(compute_dtype)               # (K, N, C)
    kk = qk[:, :, d_model:].astype(compute_dtype)              # (K, N, C)

    # Batched q . k^T on the MXU -> (K, N, N), f32 accumulation.
    score = jnp.einsum("kmd,knd->kmn", q, kk,
                       preferred_element_type=jnp.float32)
    score = score * (1.0 / math.sqrt(d_model))

    # Numerically stable softmax along the last dim.  The divide is replaced by a
    # reciprocal + multiply so it can land on the EUP slot.
    score = score - jnp.max(score, axis=-1, keepdims=True)
    e = jnp.exp(score)
    denom = jnp.sum(e, axis=-1, keepdims=True)
    prob = e * pl.reciprocal(denom, approx=approx_recip)

    # Dropout: identity at inference time (nn.Dropout eval mode).
    # TODO(synk): for production N < 128, emit a lane-dense (K, N*N) output and
    # reshape in the wrapper to avoid masked vst.msk stores; typical graph sizes
    # (N >= 128) already store unmasked with this (K, N, N) layout.
    o_ref[...] = prob.astype(o_ref.dtype)


def spatial_graph_construct(x, weights, d_model, *, mxu_bf16=False,
                            approx_recip=None):
    """x: (B, T, N, C); weights: (K, C, 2C). Returns (K, N, N) softmax scores.

    mxu_bf16=True casts MXU operands to bfloat16 (f32 accumulation) — the main
    compute lever on v6e/v7x; it changes results at ~1e-3 level, so it is gated.
    """
    B, T, N, C = x.shape
    assert C == d_model
    K = weights.shape[0]
    if approx_recip is None:
        approx_recip = mxu_bf16

    # Hoisted mean over (batch, time): identical for every pattern k, so compute
    # it exactly once outside the kernel instead of K times on the VPU.
    x_mean = jnp.mean(x, axis=(0, 1), dtype=jnp.float32)       # (N, C)

    kernel = partial(
        _spatial_graph_kernel,
        d_model=d_model,
        compute_dtype=jnp.bfloat16 if mxu_bf16 else jnp.float32,
        approx_recip=approx_recip,
    )
    # Single invocation (no grid): everything involved is tiny and VMEM-resident
    # ((N,C) mean, (K,C,2C) weights, (K,N,N) scores), so grid overhead is avoided.
    return pl.pallas_call(
        kernel,
        out_shape=jax.ShapeDtypeStruct((K, N, N), jnp.float32),
        in_specs=[
            pl.BlockSpec(memory_space=pltpu.MemorySpace.VMEM),   # x_mean (N, C)
            pl.BlockSpec(memory_space=pltpu.MemorySpace.VMEM),   # weights (K, C, 2C)
        ],
        out_specs=pl.BlockSpec(memory_space=pltpu.MemorySpace.VMEM),
    )(x_mean, weights)


def _reference(x, weights, d_model):
    x_mean = jnp.mean(x, axis=(0, 1))                                  # (N, C)
    qks = jnp.einsum("kcd,nc->knd", weights, x_mean)                   # (K, N, 2C)
    q, k = qks[..., :d_model], qks[..., d_model:]
    score = jnp.einsum("kmd,knd->kmn", q, k) / math.sqrt(d_model)
    return jax.nn.softmax(score, axis=-1)


if __name__ == "__main__":
    # Small shapes consistent with the module's forward:
    # x: (batch, seq, num_nodes, d_model); weights: (times, d_model, 2*d_model)
    B, T, N, d_model = 2, 8, 16, 32
    times = 4

    key = jax.random.PRNGKey(0)
    kx, kw = jax.random.split(key)
    x = jax.random.normal(kx, (B, T, N, d_model), dtype=jnp.float32)
    weights = (jax.random.normal(kw, (times, d_model, 2 * d_model),
                                 dtype=jnp.float32) * (1.0 / math.sqrt(d_model)))

    ref = _reference(x, weights, d_model)

    # Exact path: f32 MXU operands, exact reciprocal.
    score = jax.block_until_ready(spatial_graph_construct(x, weights, d_model))
    assert score.shape == (times, N, N)
    assert jnp.allclose(score, ref, atol=1e-5, rtol=1e-5), "mismatch vs reference (f32 path)"

    # Fast path: bf16 MXU operands (f32 accumulation) + approx EUP reciprocal.
    score_fast = jax.block_until_ready(
        spatial_graph_construct(x, weights, d_model, mxu_bf16=True))
    assert jnp.allclose(score_fast, ref, atol=2e-2, rtol=2e-2), "mismatch vs reference (bf16 path)"

    print("KERNEL_OK")
</pallas_src>

<mosaic_0001>
module attributes {stable_mosaic.version = 11 : i64} {
  func.func @_spatial_graph_kernel(%arg0: memref<16x32xf32, #tpu.memory_space<vmem>>, %arg1: memref<4x32x64xf32, #tpu.memory_space<vmem>>, %arg2: memref<4x16x16xf32, #tpu.memory_space<vmem>>) attributes {dimension_semantics = [], scalar_prefetch = 0 : i64, scratch_operands = 0 : i64, tpu.core_type = #tpu.core_type<tc>} {
    %c0 = arith.constant 0 : index
    %c0_0 = arith.constant 0 : index
    %0 = vector.load %arg0[%c0, %c0_0] : memref<16x32xf32, #tpu.memory_space<vmem>>, vector<16x32xf32>
    %c0_1 = arith.constant 0 : index
    %c0_2 = arith.constant 0 : index
    %c0_3 = arith.constant 0 : index
    %1 = vector.load %arg1[%c0_1, %c0_2, %c0_3] : memref<4x32x64xf32, #tpu.memory_space<vmem>>, vector<4x32x64xf32>
    %2 = vector.shape_cast %0 : vector<16x32xf32> to vector<1x16x32xf32>
    %3 = vector.shape_cast %2 : vector<1x16x32xf32> to vector<1x16x32xf32>
    %4 = vector.broadcast %3 : vector<1x16x32xf32> to vector<4x16x32xf32>
    "tpu.trace_start"() <{level = 10 : i32, message = "knc,kcd->knd"}> : () -> ()
    %cst = arith.constant dense<0.000000e+00> : vector<4x16x64xf32>
    %5 = tpu.matmul %4, %1, %cst {dimension_numbers = #tpu.dot_dimension_numbers<[2], [1], [1], [2], [0, 0, 0, 1, 1, 2], [0], [0]>} : vector<4x16x32xf32>, vector<4x32x64xf32>, vector<4x16x64xf32> -> vector<4x16x64xf32>
    "tpu.trace_stop"() : () -> ()
    %6 = vector.extract_strided_slice %5 {offsets = [0, 0, 0], sizes = [4, 16, 32], strides = [1, 1, 1]} : vector<4x16x64xf32> to vector<4x16x32xf32>
    %7 = vector.extract_strided_slice %5 {offsets = [0, 0, 32], sizes = [4, 16, 32], strides = [1, 1, 1]} : vector<4x16x64xf32> to vector<4x16x32xf32>
    "tpu.trace_start"() <{level = 10 : i32, message = "kmd,knd->kmn"}> : () -> ()
    %cst_4 = arith.constant dense<0.000000e+00> : vector<4x16x16xf32>
    %8 = tpu.matmul %6, %7, %cst_4 {dimension_numbers = #tpu.dot_dimension_numbers<[2], [2], [1], [1], [0, 0, 0, 1, 1, 1], [0], [0]>} : vector<4x16x32xf32>, vector<4x16x32xf32>, vector<4x16x16xf32> -> vector<4x16x16xf32>
    "tpu.trace_stop"() : () -> ()
    %cst_5 = arith.constant 0.176776692 : f32
    %9 = vector.broadcast %cst_5 : f32 to vector<4x16x16xf32>
    %10 = arith.mulf %8, %9 : vector<4x16x16xf32>
    %cst_6 = arith.constant dense<0xFF800000> : vector<4x16xf32>
    %11 = vector.multi_reduction <maximumf>, %10, %cst_6 [2] : vector<4x16x16xf32> to vector<4x16xf32>
    %12 = vector.shape_cast %11 : vector<4x16xf32> to vector<4x16x1xf32>
    %13 = vector.broadcast %12 : vector<4x16x1xf32> to vector<4x16x16xf32>
    %14 = arith.subf %10, %13 : vector<4x16x16xf32>
    %15 = math.exp %14 : vector<4x16x16xf32>
    %cst_7 = arith.constant dense<0.000000e+00> : vector<4x16xf32>
    %16 = vector.multi_reduction <add>, %15, %cst_7 [2] : vector<4x16x16xf32> to vector<4x16xf32>
    %17 = vector.shape_cast %16 : vector<4x16xf32> to vector<4x16x1xf32>
    %18 = tpu.reciprocal %17 : vector<4x16x1xf32> -> vector<4x16x1xf32>
    %19 = vector.broadcast %18 : vector<4x16x1xf32> to vector<4x16x16xf32>
    %20 = arith.mulf %15, %19 : vector<4x16x16xf32>
    %c0_8 = arith.constant 0 : index
    %c0_9 = arith.constant 0 : index
    %c0_10 = arith.constant 0 : index
    %21 = vector.load %arg2[%c0_8, %c0_9, %c0_10] : memref<4x16x16xf32, #tpu.memory_space<vmem>>, vector<4x16x16xf32>
    tpu.vector_store %arg2[%c0_8, %c0_9, %c0_10], %20 {strides = array<i32>} : memref<4x16x16xf32, #tpu.memory_space<vmem>>, vector<4x16x16xf32>,
    return
  }
}

</mosaic_0001>

<llo_original>
// kernel: tpu_custom_call.1
$region0: #{tpu_custom_call.1}
  #allocation0 [shape = 'u32[]', space=smem, size = 0x4, offset = 0x4, fixed_abs, tag = 'smem constant byte address 0x4 - core index']
  #allocation1 [shape = 'u32[144,128]{1,0:T(1,128)}', space=vmem, size = 0x12000, scoped, tag = 'internal scratch']
  %s0 = inlined_call_operand.hbm [shape: f32[16,32], index: 0, kind: input, shape index: {}]
  %s1 = inlined_call_operand.hbm [shape: f32[4,32,64], index: 1, kind: input, shape index: {}]
  %s2 = inlined_call_operand.hbm [shape: f32[4,16,16], index: 2, kind: output, shape index: {}]
  %s3 = sld [smem:[#allocation0]]
  $region26: #{tpu_custom_call.1} parent=0
    _
  %s5 = ssub.s32 1, %s3
  %s6 = scalar_select 0, %s5, %s3
  $region1: #{tpu_custom_call.1} parent=0
    #allocation2 [shape = 'u8[8192]{0}', space=vmem, size = 0x2000, scoped, tag = 'input window, operand 0, single buffered']
    #allocation3 [shape = 's32[1]{0}', space=sflag, size = 0x4, scoped, tag = 'scoped memory for tpu_custom_call.1']
    #allocation4 [shape = 's32[1]{0}', space=sflag, size = 0x4, scoped, tag = 'scoped memory for tpu_custom_call.1']
    #allocation5 [shape = 'u8[65536]{0}', space=vmem, size = 0x10000, scoped, tag = 'input window, operand 1, single buffered']
    #allocation6 [shape = 's32[1]{0}', space=sflag, size = 0x4, scoped, tag = 'scoped memory for tpu_custom_call.1']
    #allocation7 [shape = 'u8[32768]{0}', space=vmem, size = 0x8000, scoped, tag = 'output window, operand 0, single buffered']
    %7 = vsyncpa [#allocation3], 0
    %8 = vsyncpa [#allocation6], 0
    %9 = vsyncpa [#allocation4], 0
    // Predicated region
    $region2: #{tpu_custom_call.1} parent=1 // pred_check
      _
    $region3: #{tpu_custom_call.1} parent=1 // pred_check_branch
      %11 = sbr.rel (0) target = $region5
    $region4: #{tpu_custom_call.1} parent=1 // pred_region
      %s13 = ssub.s32 256, 256
      %14 = vsyncadd [#allocation3], %s13
      %s15 = sshll.u32 [#allocation2], 4
      %s16 = int_to_ptr.vmem [resolvable:$true] %s15
      %21 = dma.hbm_to_vmem [thread:$0]  %s0, 256, %s16, [#allocation3], 128, 128, 8
    $region5: #{tpu_custom_call.1} parent=1 // pred_fallthru
      _
    // Predicated region
    $region6: #{tpu_custom_call.1} parent=1 // pred_check
      _
    $region7: #{tpu_custom_call.1} parent=1 // pred_check_branch
      %23 = sbr.rel (0) target = $region9
    $region8: #{tpu_custom_call.1} parent=1 // pred_region
      %s25 = ssub.s32 2048, 2048
      %26 = vsyncadd [#allocation6], %s25
      %s27 = sshll.u32 [#allocation5], 4
      %s28 = int_to_ptr.vmem [resolvable:$true] %s27
      %33 = dma.hbm_to_vmem [thread:$0]  %s1, 2048, %s28, [#allocation6], 128, 128, 8
    $region9: #{tpu_custom_call.1} parent=1 // pred_fallthru
      _
    // Predicated region
    $region10: #{tpu_custom_call.1} parent=1 // pred_check
      _
    $region11: #{tpu_custom_call.1} parent=1 // pred_check_branch
      %35 = sbr.rel (0) target = $region13
    $region12: #{tpu_custom_call.1} parent=1 // pred_region
      %36 = dma.done [#allocation3], 256
    $region13: #{tpu_custom_call.1} parent=1 // pred_fallthru
      _
    // Predicated region
    $region14: #{tpu_custom_call.1} parent=1 // pred_check
      _
    $region15: #{tpu_custom_call.1} parent=1 // pred_check_branch
      %38 = sbr.rel (0) target = $region17
    $region16: #{tpu_custom_call.1} parent=1 // pred_region
      %39 = dma.done [#allocation6], 2048
    $region17: #{tpu_custom_call.1} parent=1 // pred_fallthru
      _
    %v40 = vld [vmem:[#allocation2] sm:$0xff]
    %v41 = vld [vmem:[#allocation2 + $0x8] sm:$0xff]
    %v42 = vld [vmem:[#allocation5] sm:$0xff]
    %v43 = vld [vmem:[#allocation5 + $0x8] sm:$0xff]
    %v44 = vld [vmem:[#allocation5 + $0x10] sm:$0xff]
    %v45 = vld [vmem:[#allocation5 + $0x18] sm:$0xff]
    %v46 = vld [vmem:[#allocation5 + $0x20] sm:$0xff]
    %v47 = vld [vmem:[#allocation5 + $0x28] sm:$0xff]
    %v48 = vld [vmem:[#allocation5 + $0x30] sm:$0xff]
    %v49 = vld [vmem:[#allocation5 + $0x38] sm:$0xff]
    %v50 = vld [vmem:[#allocation5 + $0x40] sm:$0xff]
    %v51 = vld [vmem:[#allocation5 + $0x48] sm:$0xff]
    %v52 = vld [vmem:[#allocation5 + $0x50] sm:$0xff]
    %v53 = vld [vmem:[#allocation5 + $0x58] sm:$0xff]
    %v54 = vld [vmem:[#allocation5 + $0x60] sm:$0xff]
    %v55 = vld [vmem:[#allocation5 + $0x68] sm:$0xff]
    %v56 = vld [vmem:[#allocation5 + $0x70] sm:$0xff]
    %v57 = vld [vmem:[#allocation5 + $0x78] sm:$0xff]
    %vm58 = vcmask 261120
    %v60 = vsel %vm58, %v40, 0
    %v63 = vsel %vm58, %v41, 0
    %65 = vmatprep.subr.mxu0 0.0
    %66 = vmatpush1.msra.mxu0 %v42
    %67 = vmatprep.subr.mxu0 0.0
    %68 = vmatpush1.msra.mxu0 %v43
    %69 = vmatprep.subr.mxu0 0.0
    %70 = vmatpush1.msra.mxu0 %v44
    %71 = vmatprep.subr.mxu0 0.0
    %72 = vmatpush1.msra.mxu0 %v45
    %73 = vmatprep.subr.mxu0 0.0
    %74 = vmatpush1.msra.mxu0 0.0
    %75 = vmatprep.subr.mxu0 0.0
    %76 = vmatpush1.msra.mxu0 0.0
    %77 = vmatprep.subr.mxu0 0.0
    %78 = vmatpush1.msra.mxu0 0.0
    %79 = vmatprep.subr.mxu0 0.0
    %80 = vmatpush1.msra.mxu0 0.0
    %81 = vmatprep.subr.mxu0 0.0
    %82 = vmatpush1.msra.mxu0 0.0
    %83 = vmatprep.subr.mxu0 0.0
    %84 = vmatpush1.msra.mxu0 0.0
    %85 = vmatprep.subr.mxu0 0.0
    %86 = vmatpush1.msra.mxu0 0.0
    %87 = vmatprep.subr.mxu0 0.0
    %88 = vmatpush1.msra.mxu0 0.0
    %89 = vmatprep.subr.mxu0 0.0
    %90 = vmatpush1.msra.mxu0 0.0
    %91 = vmatprep.subr.mxu0 0.0
    %92 = vmatpush1.msra.mxu0 0.0
    %93 = vmatprep.subr.mxu0 0.0
    %94 = vmatpush1.msra.mxu0 0.0
    %95 = vmatprep.subr.mxu0 0.0
    %96 = vmatpush1.msra.mxu0 0.0
    %97 = vmatprep.subr.mxu0 0.0
    %98 = vmatpush1.msra.mxu0 0.0
    %99 = vmatprep.subr.mxu0 0.0
    %100 = vmatpush1.msra.mxu0 0.0
    %101 = vmatprep.subr.mxu0 0.0
    %102 = vmatpush1.msra.mxu0 0.0
    %103 = vmatprep.subr.mxu0 0.0
    %104 = vmatpush1.msra.mxu0 0.0
    %105 = vmatprep.subr.mxu0 0.0
    %106 = vmatpush1.msra.mxu0 0.0
    %107 = vmatprep.subr.mxu0 0.0
    %108 = vmatpush1.msra.mxu0 0.0
    %109 = vmatprep.subr.mxu0 0.0
    %110 = vmatpush1.msra.mxu0 0.0
    %111 = vmatprep.subr.mxu0 0.0
    %112 = vmatpush1.msra.mxu0 0.0
    %113 = vmatprep.subr.mxu0 0.0
    %114 = vmatpush1.msra.mxu0 0.0
    %115 = vmatprep.subr.mxu0 0.0
    %116 = vmatpush1.msra.mxu0 0.0
    %117 = vmatprep.subr.mxu0 0.0
    %118 = vmatpush1.msra.mxu0 0.0
    %119 = vmatprep.subr.mxu0 0.0
    %120 = vmatpush1.msra.mxu0 0.0
    %121 = vmatprep.subr.mxu0 0.0
    %122 = vmatpush1.msra.mxu0 0.0
    %123 = vmatprep.subr.mxu0 0.0
    %124 = vmatpush1.msra.mxu0 0.0
    %125 = vmatprep.subr.mxu0 0.0
    %126 = vmatpush1.msra.mxu0 0.0
    %127 = vmatprep.subr.mxu0 0.0
    %128 = vmatpush1.msra.mxu0 0.0
    %129 = vmatprep.mubr.f32.mxu0 0.0
    %130 = vmatmul.mubr.f32.gmra.mrb[0].mxu0 %v60
    %v131 = vpop.f32.mrb[0].mxu0
    %v132 = vadd.f32 0.0, %v131
    %v133 = vpop.f32.mrb[0].mxu0
    %134 = vmatprep.mubr.f32.mxu0 0.0
    %135 = vmatmul.mubr.f32.gmra.mrb[0].mxu0 %v63
    %v136 = vpop.f32.mrb[0].mxu0
    %v137 = vadd.f32 0.0, %v136
    %v138 = vpop.f32.mrb[0].mxu0
    %139 = vdwg.mxu0
    %140 = vmatprep.subr.mxu0 0.0
    %141 = vmatpush1.msra.mxu0 %v46
    %142 = vmatprep.subr.mxu0 0.0
    %143 = vmatpush1.msra.mxu0 %v47
    %144 = vmatprep.subr.mxu0 0.0
    %145 = vmatpush1.msra.mxu0 %v48
    %146 = vmatprep.subr.mxu0 0.0
    %147 = vmatpush1.msra.mxu0 %v49
    %148 = vmatprep.subr.mxu0 0.0
    %149 = vmatpush1.msra.mxu0 0.0
    %150 = vmatprep.subr.mxu0 0.0
    %151 = vmatpush1.msra.mxu0 0.0
    %152 = vmatprep.subr.mxu0 0.0
    %153 = vmatpush1.msra.mxu0 0.0
    %154 = vmatprep.subr.mxu0 0.0
    %155 = vmatpush1.msra.mxu0 0.0
    %156 = vmatprep.subr.mxu0 0.0
    %157 = vmatpush1.msra.mxu0 0.0
    %158 = vmatprep.subr.mxu0 0.0
    %159 = vmatpush1.msra.mxu0 0.0
    %160 = vmatprep.subr.mxu0 0.0
    %161 = vmatpush1.msra.mxu0 0.0
    %162 = vmatprep.subr.mxu0 0.0
    %163 = vmatpush1.msra.mxu0 0.0
    %164 = vmatprep.subr.mxu0 0.0
    %165 = vmatpush1.msra.mxu0 0.0
    %166 = vmatprep.subr.mxu0 0.0
    %167 = vmatpush1.msra.mxu0 0.0
    %168 = vmatprep.subr.mxu0 0.0
    %169 = vmatpush1.msra.mxu0 0.0
    %170 = vmatprep.subr.mxu0 0.0
    %171 = vmatpush1.msra.mxu0 0.0
    %172 = vmatprep.subr.mxu0 0.0
    %173 = vmatpush1.msra.mxu0 0.0
    %174 = vmatprep.subr.mxu0 0.0
    %175 = vmatpush1.msra.mxu0 0.0
    %176 = vmatprep.subr.mxu0 0.0
    %177 = vmatpush1.msra.mxu0 0.0
    %178 = vmatprep.subr.mxu0 0.0
    %179 = vmatpush1.msra.mxu0 0.0
    %180 = vmatprep.subr.mxu0 0.0
    %181 = vmatpush1.msra.mxu0 0.0
    %182 = vmatprep.subr.mxu0 0.0
    %183 = vmatpush1.msra.mxu0 0.0
    %184 = vmatprep.subr.mxu0 0.0
    %185 = vmatpush1.msra.mxu0 0.0
    %186 = vmatprep.subr.mxu0 0.0
    %187 = vmatpush1.msra.mxu0 0.0
    %188 = vmatprep.subr.mxu0 0.0
    %189 = vmatpush1.msra.mxu0 0.0
    %190 = vmatprep.subr.mxu0 0.0
    %191 = vmatpush1.msra.mxu0 0.0
    %192 = vmatprep.subr.mxu0 0.0
    %193 = vmatpush1.msra.mxu0 0.0
    %194 = vmatprep.subr.mxu0 0.0
    %195 = vmatpush1.msra.mxu0 0.0
    %196 = vmatprep.subr.mxu0 0.0
    %197 = vmatpush1.msra.mxu0 0.0
    %198 = vmatprep.subr.mxu0 0.0
    %199 = vmatpush1.msra.mxu0 0.0
    %200 = vmatprep.subr.mxu0 0.0
    %201 = vmatpush1.msra.mxu0 0.0
    %202 = vmatprep.subr.mxu0 0.0
    %203 = vmatpush1.msra.mxu0 0.0
    %204 = vmatprep.mubr.f32.mxu0 0.0
    %205 = vmatmul.mubr.f32.gmra.mrb[0].mxu0 %v60
    %v206 = vpop.f32.mrb[0].mxu0
    %v207 = vadd.f32 0.0, %v206
    %v208 = vpop.f32.mrb[0].mxu0
    %209 = vmatprep.mubr.f32.mxu0 0.0
    %210 = vmatmul.mubr.f32.gmra.mrb[0].mxu0 %v63
    %v211 = vpop.f32.mrb[0].mxu0
    %v212 = vadd.f32 0.0, %v211
    %v213 = vpop.f32.mrb[0].mxu0
    %214 = vdwg.mxu0
    %215 = vmatprep.subr.mxu0 0.0
    %216 = vmatpush1.msra.mxu0 %v50
    %217 = vmatprep.subr.mxu0 0.0
    %218 = vmatpush1.msra.mxu0 %v51
    %219 = vmatprep.subr.mxu0 0.0
    %220 = vmatpush1.msra.mxu0 %v52
    %221 = vmatprep.subr.mxu0 0.0
    %222 = vmatpush1.msra.mxu0 %v53
    %223 = vmatprep.subr.mxu0 0.0
    %224 = vmatpush1.msra.mxu0 0.0
    %225 = vmatprep.subr.mxu0 0.0
    %226 = vmatpush1.msra.mxu0 0.0
    %227 = vmatprep.subr.mxu0 0.0
    %228 = vmatpush1.msra.mxu0 0.0
    %229 = vmatprep.subr.mxu0 0.0
    %230 = vmatpush1.msra.mxu0 0.0
    %231 = vmatprep.subr.mxu0 0.0
    %232 = vmatpush1.msra.mxu0 0.0
    %233 = vmatprep.subr.mxu0 0.0
    %234 = vmatpush1.msra.mxu0 0.0
    %235 = vmatprep.subr.mxu0 0.0
    %236 = vmatpush1.msra.mxu0 0.0
    %237 = vmatprep.subr.mxu0 0.0
    %238 = vmatpush1.msra.mxu0 0.0
    %239 = vmatprep.subr.mxu0 0.0
    %240 = vmatpush1.msra.mxu0 0.0
    %241 = vmatprep.subr.mxu0 0.0
    %242 = vmatpush1.msra.mxu0 0.0
    %243 = vmatprep.subr.mxu0 0.0
    %244 = vmatpush1.msra.mxu0 0.0
    %245 = vmatprep.subr.mxu0 0.0
    %246 = vmatpush1.msra.mxu0 0.0
    %247 = vmatprep.subr.mxu0 0.0
    %248 = vmatpush1.msra.mxu0 0.0
    %249 = vmatprep.subr.mxu0 0.0
    %250 = vmatpush1.msra.mxu0 0.0
    %251 = vmatprep.subr.mxu0 0.0
    %252 = vmatpush1.msra.mxu0 0.0
    %253 = vmatprep.subr.mxu0 0.0
    %254 = vmatpush1.msra.mxu0 0.0
    %255 = vmatprep.subr.mxu0 0.0
    %256 = vmatpush1.msra.mxu0 0.0
    %257 = vmatprep.subr.mxu0 0.0
    %258 = vmatpush1.msra.mxu0 0.0
    %259 = vmatprep.subr.mxu0 0.0
    %260 = vmatpush1.msra.mxu0 0.0
    %261 = vmatprep.subr.mxu0 0.0
    %262 = vmatpush1.msra.mxu0 0.0
    %263 = vmatprep.subr.mxu0 0.0
    %264 = vmatpush1.msra.mxu0 0.0
    %265 = vmatprep.subr.mxu0 0.0
    %266 = vmatpush1.msra.mxu0 0.0
    %267 = vmatprep.subr.mxu0 0.0
    %268 = vmatpush1.msra.mxu0 0.0
    %269 = vmatprep.subr.mxu0 0.0
    %270 = vmatpush1.msra.mxu0 0.0
    %271 = vmatprep.subr.mxu0 0.0
    %272 = vmatpush1.msra.mxu0 0.0
    %273 = vmatprep.subr.mxu0 0.0
    %274 = vmatpush1.msra.mxu0 0.0
    %275 = vmatprep.subr.mxu0 0.0
    %276 = vmatpush1.msra.mxu0 0.0
    %277 = vmatprep.subr.mxu0 0.0
    %278 = vmatpush1.msra.mxu0 0.0
    %279 = vmatprep.mubr.f32.mxu0 0.0
    %280 = vmatmul.mubr.f32.gmra.mrb[0].mxu0 %v60
    %v281 = vpop.f32.mrb[0].mxu0
    %v282 = vadd.f32 0.0, %v281
    %v283 = vpop.f32.mrb[0].mxu0
    %284 = vmatprep.mubr.f32.mxu0 0.0
    %285 = vmatmul.mubr.f32.gmra.mrb[0].mxu0 %v63
    %v286 = vpop.f32.mrb[0].mxu0
    %v287 = vadd.f32 0.0, %v286
    %v288 = vpop.f32.mrb[0].mxu0
    %289 = vdwg.mxu0
    %290 = vmatprep.subr.mxu0 0.0
    %291 = vmatpush1.msra.mxu0 %v54
    %292 = vmatprep.subr.mxu0 0.0
    %293 = vmatpush1.msra.mxu0 %v55
    %294 = vmatprep.subr.mxu0 0.0
    %295 = vmatpush1.msra.mxu0 %v56
    %296 = vmatprep.subr.mxu0 0.0
    %297 = vmatpush1.msra.mxu0 %v57
    %298 = vmatprep.subr.mxu0 0.0
    %299 = vmatpush1.msra.mxu0 0.0
    %300 = vmatprep.subr.mxu0 0.0
    %301 = vmatpush1.msra.mxu0 0.0
    %302 = vmatprep.subr.mxu0 0.0
    %303 = vmatpush1.msra.mxu0 0.0
    %304 = vmatprep.subr.mxu0 0.0
    %305 = vmatpush1.msra.mxu0 0.0
    %306 = vmatprep.subr.mxu0 0.0
    %307 = vmatpush1.msra.mxu0 0.0
    %308 = vmatprep.subr.mxu0 0.0
    %309 = vmatpush1.msra.mxu0 0.0
    %310 = vmatprep.subr.mxu0 0.0
    %311 = vmatpush1.msra.mxu0 0.0
    %312 = vmatprep.subr.mxu0 0.0
    %313 = vmatpush1.msra.mxu0 0.0
    %314 = vmatprep.subr.mxu0 0.0
    %315 = vmatpush1.msra.mxu0 0.0
    %316 = vmatprep.subr.mxu0 0.0
    %317 = vmatpush1.msra.mxu0 0.0
    %318 = vmatprep.subr.mxu0 0.0
    %319 = vmatpush1.msra.mxu0 0.0
    %320 = vmatprep.subr.mxu0 0.0
    %321 = vmatpush1.msra.mxu0 0.0
    %322 = vmatprep.subr.mxu0 0.0
    %323 = vmatpush1.msra.mxu0 0.0
    %324 = vmatprep.subr.mxu0 0.0
    %325 = vmatpush1.msra.mxu0 0.0
    %326 = vmatprep.subr.mxu0 0.0
    %327 = vmatpush1.msra.mxu0 0.0
    %328 = vmatprep.subr.mxu0 0.0
    %329 = vmatpush1.msra.mxu0 0.0
    %330 = vmatprep.subr.mxu0 0.0
    %331 = vmatpush1.msra.mxu0 0.0
    %332 = vmatprep.subr.mxu0 0.0
    %333 = vmatpush1.msra.mxu0 0.0
    %334 = vmatprep.subr.mxu0 0.0
    %335 = vmatpush1.msra.mxu0 0.0
    %336 = vmatprep.subr.mxu0 0.0
    %337 = vmatpush1.msra.mxu0 0.0
    %338 = vmatprep.subr.mxu0 0.0
    %339 = vmatpush1.msra.mxu0 0.0
    %340 = vmatprep.subr.mxu0 0.0
    %341 = vmatpush1.msra.mxu0 0.0
    %342 = vmatprep.subr.mxu0 0.0
    %343 = vmatpush1.msra.mxu0 0.0
    %344 = vmatprep.subr.mxu0 0.0
    %345 = vmatpush1.msra.mxu0 0.0
    %346 = vmatprep.subr.mxu0 0.0
    %347 = vmatpush1.msra.mxu0 0.0
    %348 = vmatprep.subr.mxu0 0.0
    %349 = vmatpush1.msra.mxu0 0.0
    %350 = vmatprep.subr.mxu0 0.0
    %351 = vmatpush1.msra.mxu0 0.0
    %352 = vmatprep.subr.mxu0 0.0
    %353 = vmatpush1.msra.mxu0 0.0
    %354 = vmatprep.mubr.f32.mxu0 0.0
    %355 = vmatmul.mubr.f32.gmra.mrb[0].mxu0 %v60
    %v356 = vpop.f32.mrb[0].mxu0
    %v357 = vadd.f32 0.0, %v356
    %v358 = vpop.f32.mrb[0].mxu0
    %359 = vmatprep.mubr.f32.mxu0 0.0
    %360 = vmatmul.mubr.f32.gmra.mrb[0].mxu0 %v63
    %v361 = vpop.f32.mrb[0].mxu0
    %v362 = vadd.f32 0.0, %v361
    %v363 = vpop.f32.mrb[0].mxu0
    %364 = vdwg.mxu0
    %367 = vrot.lane.b32.xlu0 %v132, 96
    %v368 = vpop.permute.xlu0 %367
    %369 = vrot.lane.b32.xlu0 %v137, 96
    %v370 = vpop.permute.xlu0 %369
    %v371 = vsel %vm58, %v132, 0
    %v373 = vsel %vm58, %v137, 0
    %v375 = vsel %vm58, %v368, 0
    %v377 = vsel %vm58, %v370, 0
    %379 = vmatprep.subr.mxu0 0.0
    %380 = vmatpush1.xpose.msra.mxu0 %v375
    %381 = vmatprep.subr.mxu0 0.0
    %382 = vmatpush1.xpose.msra.mxu0 %v377
    %383 = vmatprep.subr.mxu0 0.0
    %384 = vmatpush1.xpose.msra.mxu0 0.0
    %385 = vmatprep.subr.mxu0 0.0
    %386 = vmatpush1.xpose.msra.mxu0 0.0
    %387 = vmatprep.subr.mxu0 0.0
    %388 = vmatpush1.xpose.msra.mxu0 0.0
    %389 = vmatprep.subr.mxu0 0.0
    %390 = vmatpush1.xpose.msra.mxu0 0.0
    %391 = vmatprep.subr.mxu0 0.0
    %392 = vmatpush1.xpose.msra.mxu0 0.0
    %393 = vmatprep.subr.mxu0 0.0
    %394 = vmatpush1.xpose.msra.mxu0 0.0
    %395 = vmatprep.subr.mxu0 0.0
    %396 = vmatpush1.xpose.msra.mxu0 0.0
    %397 = vmatprep.subr.mxu0 0.0
    %398 = vmatpush1.xpose.msra.mxu0 0.0
    %399 = vmatprep.subr.mxu0 0.0
    %400 = vmatpush1.xpose.msra.mxu0 0.0
    %401 = vmatprep.subr.mxu0 0.0
    %402 = vmatpush1.xpose.msra.mxu0 0.0
    %403 = vmatprep.subr.mxu0 0.0
    %404 = vmatpush1.xpose.msra.mxu0 0.0
    %405 = vmatprep.subr.mxu0 0.0
    %406 = vmatpush1.xpose.msra.mxu0 0.0
    %407 = vmatprep.subr.mxu0 0.0
    %408 = vmatpush1.xpose.msra.mxu0 0.0
    %409 = vmatprep.subr.mxu0 0.0
    %410 = vmatpush1.xpose.msra.mxu0 0.0
    %411 = vmatprep.subr.mxu0 0.0
    %412 = vmatpush1.xpose.msra.mxu0 0.0
    %413 = vmatprep.subr.mxu0 0.0
    %414 = vmatpush1.xpose.msra.mxu0 0.0
    %415 = vmatprep.subr.mxu0 0.0
    %416 = vmatpush1.xpose.msra.mxu0 0.0
    %417 = vmatprep.subr.mxu0 0.0
    %418 = vmatpush1.xpose.msra.mxu0 0.0
    %419 = vmatprep.subr.mxu0 0.0
    %420 = vmatpush1.xpose.msra.mxu0 0.0
    %421 = vmatprep.subr.mxu0 0.0
    %422 = vmatpush1.xpose.msra.mxu0 0.0
    %423 = vmatprep.subr.mxu0 0.0
    %424 = vmatpush1.xpose.msra.mxu0 0.0
    %425 = vmatprep.subr.mxu0 0.0
    %426 = vmatpush1.xpose.msra.mxu0 0.0
    %427 = vmatprep.subr.mxu0 0.0
    %428 = vmatpush1.xpose.msra.mxu0 0.0
    %429 = vmatprep.subr.mxu0 0.0
    %430 = vmatpush1.xpose.msra.mxu0 0.0
    %431 = vmatprep.subr.mxu0 0.0
    %432 = vmatpush1.xpose.msra.mxu0 0.0
    %433 = vmatprep.subr.mxu0 0.0
    %434 = vmatpush1.xpose.msra.mxu0 0.0
    %435 = vmatprep.subr.mxu0 0.0
    %436 = vmatpush1.xpose.msra.mxu0 0.0
    %437 = vmatprep.subr.mxu0 0.0
    %438 = vmatpush1.xpose.msra.mxu0 0.0
    %439 = vmatprep.subr.mxu0 0.0
    %440 = vmatpush1.xpose.msra.mxu0 0.0
    %441 = vmatprep.subr.mxu0 0.0
    %442 = vmatpush1.xpose.msra.mxu0 0.0
    %443 = vmatprep.mubr.f32.mxu0 0.0
    %444 = vmatmul.mubr.f32.gmra.mrb[0].mxu0 %v371
    %v445 = vpop.f32.mrb[0].mxu0
    %v446 = vadd.f32 0.0, %v445
    %v447 = vpop.f32.mrb[0].mxu0
    %448 = vmatprep.mubr.f32.mxu0 0.0
    %449 = vmatmul.mubr.f32.gmra.mrb[0].mxu0 %v373
    %v450 = vpop.f32.mrb[0].mxu0
    %v451 = vadd.f32 0.0, %v450
    %v452 = vpop.f32.mrb[0].mxu0
    %453 = vdwg.mxu0
    %456 = vrot.lane.b32.xlu0 %v207, 96
    %v457 = vpop.permute.xlu0 %456
    %458 = vrot.lane.b32.xlu0 %v212, 96
    %v459 = vpop.permute.xlu0 %458
    %v460 = vsel %vm58, %v207, 0
    %v462 = vsel %vm58, %v212, 0
    %v464 = vsel %vm58, %v457, 0
    %v466 = vsel %vm58, %v459, 0
    %468 = vmatprep.subr.mxu0 0.0
    %469 = vmatpush1.xpose.msra.mxu0 %v464
    %470 = vmatprep.subr.mxu0 0.0
    %471 = vmatpush1.xpose.msra.mxu0 %v466
    %472 = vmatprep.subr.mxu0 0.0
    %473 = vmatpush1.xpose.msra.mxu0 0.0
    %474 = vmatprep.subr.mxu0 0.0
    %475 = vmatpush1.xpose.msra.mxu0 0.0
    %476 = vmatprep.subr.mxu0 0.0
    %477 = vmatpush1.xpose.msra.mxu0 0.0
    %478 = vmatprep.subr.mxu0 0.0
    %479 = vmatpush1.xpose.msra.mxu0 0.0
    %480 = vmatprep.subr.mxu0 0.0
    %481 = vmatpush1.xpose.msra.mxu0 0.0
    %482 = vmatprep.subr.mxu0 0.0
    %483 = vmatpush1.xpose.msra.mxu0 0.0
    %484 = vmatprep.subr.mxu0 0.0
    %485 = vmatpush1.xpose.msra.mxu0 0.0
    %486 = vmatprep.subr.mxu0 0.0
    %487 = vmatpush1.xpose.msra.mxu0 0.0
    %488 = vmatprep.subr.mxu0 0.0
    %489 = vmatpush1.xpose.msra.mxu0 0.0
    %490 = vmatprep.subr.mxu0 0.0
    %491 = vmatpush1.xpose.msra.mxu0 0.0
    %492 = vmatprep.subr.mxu0 0.0
    %493 = vmatpush1.xpose.msra.mxu0 0.0
    %494 = vmatprep.subr.mxu0 0.0
    %495 = vmatpush1.xpose.msra.mxu0 0.0
    %496 = vmatprep.subr.mxu0 0.0
    %497 = vmatpush1.xpose.msra.mxu0 0.0
    %498 = vmatprep.subr.mxu0 0.0
    %499 = vmatpush1.xpose.msra.mxu0 0.0
    %500 = vmatprep.subr.mxu0 0.0
    %501 = vmatpush1.xpose.msra.mxu0 0.0
    %502 = vmatprep.subr.mxu0 0.0
    %503 = vmatpush1.xpose.msra.mxu0 0.0
    %504 = vmatprep.subr.mxu0 0.0
    %505 = vmatpush1.xpose.msra.mxu0 0.0
    %506 = vmatprep.subr.mxu0 0.0
    %507 = vmatpush1.xpose.msra.mxu0 0.0
    %508 = vmatprep.subr.mxu0 0.0
    %509 = vmatpush1.xpose.msra.mxu0 0.0
    %510 = vmatprep.subr.mxu0 0.0
    %511 = vmatpush1.xpose.msra.mxu0 0.0
    %512 = vmatprep.subr.mxu0 0.0
    %513 = vmatpush1.xpose.msra.mxu0 0.0
    %514 = vmatprep.subr.mxu0 0.0
    %515 = vmatpush1.xpose.msra.mxu0 0.0
    %516 = vmatprep.subr.mxu0 0.0
    %517 = vmatpush1.xpose.msra.mxu0 0.0
    %518 = vmatprep.subr.mxu0 0.0
    %519 = vmatpush1.xpose.msra.mxu0 0.0
    %520 = vmatprep.subr.mxu0 0.0
    %521 = vmatpush1.xpose.msra.mxu0 0.0
    %522 = vmatprep.subr.mxu0 0.0
    %523 = vmatpush1.xpose.msra.mxu0 0.0
    %524 = vmatprep.subr.mxu0 0.0
    %525 = vmatpush1.xpose.msra.mxu0 0.0
    %526 = vmatprep.subr.mxu0 0.0
    %527 = vmatpush1.xpose.msra.mxu0 0.0
    %528 = vmatprep.subr.mxu0 0.0
    %529 = vmatpush1.xpose.msra.mxu0 0.0
    %530 = vmatprep.subr.mxu0 0.0
    %531 = vmatpush1.xpose.msra.mxu0 0.0
    %532 = vmatprep.mubr.f32.mxu0 0.0
    %533 = vmatmul.mubr.f32.gmra.mrb[0].mxu0 %v460
    %v534 = vpop.f32.mrb[0].mxu0
    %v535 = vadd.f32 0.0, %v534
    %v536 = vpop.f32.mrb[0].mxu0
    %537 = vmatprep.mubr.f32.mxu0 0.0
    %538 = vmatmul.mubr.f32.gmra.mrb[0].mxu0 %v462
    %v539 = vpop.f32.mrb[0].mxu0
    %v540 = vadd.f32 0.0, %v539
    %v541 = vpop.f32.mrb[0].mxu0
    %542 = vdwg.mxu0
    %545 = vrot.lane.b32.xlu0 %v282, 96
    %v546 = vpop.permute.xlu0 %545
    %547 = vrot.lane.b32.xlu0 %v287, 96
    %v548 = vpop.permute.xlu0 %547
    %v549 = vsel %vm58, %v282, 0
    %v551 = vsel %vm58, %v287, 0
    %v553 = vsel %vm58, %v546, 0
    %v555 = vsel %vm58, %v548, 0
    %557 = vmatprep.subr.mxu0 0.0
    %558 = vmatpush1.xpose.msra.mxu0 %v553
    %559 = vmatprep.subr.mxu0 0.0
    %560 = vmatpush1.xpose.msra.mxu0 %v555
    %561 = vmatprep.subr.mxu0 0.0
    %562 = vmatpush1.xpose.msra.mxu0 0.0
    %563 = vmatprep.subr.mxu0 0.0
    %564 = vmatpush1.xpose.msra.mxu0 0.0
    %565 = vmatprep.subr.mxu0 0.0
    %566 = vmatpush1.xpose.msra.mxu0 0.0
    %567 = vmatprep.subr.mxu0 0.0
    %568 = vmatpush1.xpose.msra.mxu0 0.0
    %569 = vmatprep.subr.mxu0 0.0
    %570 = vmatpush1.xpose.msra.mxu0 0.0
    %571 = vmatprep.subr.mxu0 0.0
    %572 = vmatpush1.xpose.msra.mxu0 0.0
    %573 = vmatprep.subr.mxu0 0.0
    %574 = vmatpush1.xpose.msra.mxu0 0.0
    %575 = vmatprep.subr.mxu0 0.0
    %576 = vmatpush1.xpose.msra.mxu0 0.0
    %577 = vmatprep.subr.mxu0 0.0
    %578 = vmatpush1.xpose.msra.mxu0 0.0
    %579 = vmatprep.subr.mxu0 0.0
    %580 = vmatpush1.xpose.msra.mxu0 0.0
    %581 = vmatprep.subr.mxu0 0.0
    %582 = vmatpush1.xpose.msra.mxu0 0.0
    %583 = vmatprep.subr.mxu0 0.0
    %584 = vmatpush1.xpose.msra.mxu0 0.0
    %585 = vmatprep.subr.mxu0 0.0
    %586 = vmatpush1.xpose.msra.mxu0 0.0
    %587 = vmatprep.subr.mxu0 0.0
    %588 = vmatpush1.xpose.msra.mxu0 0.0
    %589 = vmatprep.subr.mxu0 0.0
    %590 = vmatpush1.xpose.msra.mxu0 0.0
    %591 = vmatprep.subr.mxu0 0.0
    %592 = vmatpush1.xpose.msra.mxu0 0.0
    %593 = vmatprep.subr.mxu0 0.0
    %594 = vmatpush1.xpose.msra.mxu0 0.0
    %595 = vmatprep.subr.mxu0 0.0
    %596 = vmatpush1.xpose.msra.mxu0 0.0
    %597 = vmatprep.subr.mxu0 0.0
    %598 = vmatpush1.xpose.msra.mxu0 0.0
    %599 = vmatprep.subr.mxu0 0.0
    %600 = vmatpush1.xpose.msra.mxu0 0.0
    %601 = vmatprep.subr.mxu0 0.0
    %602 = vmatpush1.xpose.msra.mxu0 0.0
    %603 = vmatprep.subr.mxu0 0.0
    %604 = vmatpush1.xpose.msra.mxu0 0.0
    %605 = vmatprep.subr.mxu0 0.0
    %606 = vmatpush1.xpose.msra.mxu0 0.0
    %607 = vmatprep.subr.mxu0 0.0
    %608 = vmatpush1.xpose.msra.mxu0 0.0
    %609 = vmatprep.subr.mxu0 0.0
    %610 = vmatpush1.xpose.msra.mxu0 0.0
    %611 = vmatprep.subr.mxu0 0.0
    %612 = vmatpush1.xpose.msra.mxu0 0.0
    %613 = vmatprep.subr.mxu0 0.0
    %614 = vmatpush1.xpose.msra.mxu0 0.0
    %615 = vmatprep.subr.mxu0 0.0
    %616 = vmatpush1.xpose.msra.mxu0 0.0
    %617 = vmatprep.subr.mxu0 0.0
    %618 = vmatpush1.xpose.msra.mxu0 0.0
    %619 = vmatprep.subr.mxu0 0.0
    %620 = vmatpush1.xpose.msra.mxu0 0.0
    %621 = vmatprep.mubr.f32.mxu0 0.0
    %622 = vmatmul.mubr.f32.gmra.mrb[0].mxu0 %v549
    %v623 = vpop.f32.mrb[0].mxu0
    %v624 = vadd.f32 0.0, %v623
    %v625 = vpop.f32.mrb[0].mxu0
    %626 = vmatprep.mubr.f32.mxu0 0.0
    %627 = vmatmul.mubr.f32.gmra.mrb[0].mxu0 %v551
    %v628 = vpop.f32.mrb[0].mxu0
    %v629 = vadd.f32 0.0, %v628
    %v630 = vpop.f32.mrb[0].mxu0
    %631 = vdwg.mxu0
    %634 = vrot.lane.b32.xlu0 %v357, 96
    %v635 = vpop.permute.xlu0 %634
    %636 = vrot.lane.b32.xlu0 %v362, 96
    %v637 = vpop.permute.xlu0 %636
    %v638 = vsel %vm58, %v357, 0
    %v640 = vsel %vm58, %v362, 0
    %v642 = vsel %vm58, %v635, 0
    %v644 = vsel %vm58, %v637, 0
    %646 = vmatprep.subr.mxu0 0.0
    %647 = vmatpush1.xpose.msra.mxu0 %v642
    %648 = vmatprep.subr.mxu0 0.0
    %649 = vmatpush1.xpose.msra.mxu0 %v644
    %650 = vmatprep.subr.mxu0 0.0
    %651 = vmatpush1.xpose.msra.mxu0 0.0
    %652 = vmatprep.subr.mxu0 0.0
    %653 = vmatpush1.xpose.msra.mxu0 0.0
    %654 = vmatprep.subr.mxu0 0.0
    %655 = vmatpush1.xpose.msra.mxu0 0.0
    %656 = vmatprep.subr.mxu0 0.0
    %657 = vmatpush1.xpose.msra.mxu0 0.0
    %658 = vmatprep.subr.mxu0 0.0
    %659 = vmatpush1.xpose.msra.mxu0 0.0
    %660 = vmatprep.subr.mxu0 0.0
    %661 = vmatpush1.xpose.msra.mxu0 0.0
    %662 = vmatprep.subr.mxu0 0.0
    %663 = vmatpush1.xpose.msra.mxu0 0.0
    %664 = vmatprep.subr.mxu0 0.0
    %665 = vmatpush1.xpose.msra.mxu0 0.0
    %666 = vmatprep.subr.mxu0 0.0
    %667 = vmatpush1.xpose.msra.mxu0 0.0
    %668 = vmatprep.subr.mxu0 0.0
    %669 = vmatpush1.xpose.msra.mxu0 0.0
    %670 = vmatprep.subr.mxu0 0.0
    %671 = vmatpush1.xpose.msra.mxu0 0.0
    %672 = vmatprep.subr.mxu0 0.0
    %673 = vmatpush1.xpose.msra.mxu0 0.0
    %674 = vmatprep.subr.mxu0 0.0
    %675 = vmatpush1.xpose.msra.mxu0 0.0
    %676 = vmatprep.subr.mxu0 0.0
    %677 = vmatpush1.xpose.msra.mxu0 0.0
    %678 = vmatprep.subr.mxu0 0.0
    %679 = vmatpush1.xpose.msra.mxu0 0.0
    %680 = vmatprep.subr.mxu0 0.0
    %681 = vmatpush1.xpose.msra.mxu0 0.0
    %682 = vmatprep.subr.mxu0 0.0
    %683 = vmatpush1.xpose.msra.mxu0 0.0
    %684 = vmatprep.subr.mxu0 0.0
    %685 = vmatpush1.xpose.msra.mxu0 0.0
    %686 = vmatprep.subr.mxu0 0.0
    %687 = vmatpush1.xpose.msra.mxu0 0.0
    %688 = vmatprep.subr.mxu0 0.0
    %689 = vmatpush1.xpose.msra.mxu0 0.0
    %690 = vmatprep.subr.mxu0 0.0
    %691 = vmatpush1.xpose.msra.mxu0 0.0
    %692 = vmatprep.subr.mxu0 0.0
    %693 = vmatpush1.xpose.msra.mxu0 0.0
    %694 = vmatprep.subr.mxu0 0.0
    %695 = vmatpush1.xpose.msra.mxu0 0.0
    %696 = vmatprep.subr.mxu0 0.0
    %697 = vmatpush1.xpose.msra.mxu0 0.0
    %698 = vmatprep.subr.mxu0 0.0
    %699 = vmatpush1.xpose.msra.mxu0 0.0
    %700 = vmatprep.subr.mxu0 0.0
    %701 = vmatpush1.xpose.msra.mxu0 0.0
    %702 = vmatprep.subr.mxu0 0.0
    %703 = vmatpush1.xpose.msra.mxu0 0.0
    %704 = vmatprep.subr.mxu0 0.0
    %705 = vmatpush1.xpose.msra.mxu0 0.0
    %706 = vmatprep.subr.mxu0 0.0
    %707 = vmatpush1.xpose.msra.mxu0 0.0
    %708 = vmatprep.subr.mxu0 0.0
    %709 = vmatpush1.xpose.msra.mxu0 0.0
    %710 = vmatprep.mubr.f32.mxu0 0.0
    %711 = vmatmul.mubr.f32.gmra.mrb[0].mxu0 %v638
    %v712 = vpop.f32.mrb[0].mxu0
    %v713 = vadd.f32 0.0, %v712
    %v714 = vpop.f32.mrb[0].mxu0
    %715 = vmatprep.mubr.f32.mxu0 0.0
    %716 = vmatmul.mubr.f32.gmra.mrb[0].mxu0 %v640
    %v717 = vpop.f32.mrb[0].mxu0
    %v718 = vadd.f32 0.0, %v717
    %v719 = vpop.f32.mrb[0].mxu0
    %720 = vdwg.mxu0
    %v721 = vmul.f32 %v446, 0.17677669
    %v722 = vmul.f32 %v451, 0.17677669
    %v723 = vmul.f32 %v535, 0.17677669
    %v724 = vmul.f32 %v540, 0.17677669
    %v725 = vmul.f32 %v624, 0.17677669
    %v726 = vmul.f32 %v629, 0.17677669
    %v727 = vmul.f32 %v713, 0.17677669
    %v728 = vmul.f32 %v718, 0.17677669
    %vm729 = vcmask 130048
    %v730 = vsel %vm729, %v721, -inf
    %731 = vmax.xlane.f32.xlu0 %v730
    %v732 = vpop.xlane.xlu0 %731
    %v733 = vsel %vm729, %v722, -inf
    %734 = vmax.xlane.f32.xlu0 %v733
    %v735 = vpop.xlane.xlu0 %734
    %v736 = vsel %vm729, %v723, -inf
    %737 = vmax.xlane.f32.xlu0 %v736
    %v738 = vpop.xlane.xlu0 %737
    %v739 = vsel %vm729, %v724, -inf
    %740 = vmax.xlane.f32.xlu0 %v739
    %v741 = vpop.xlane.xlu0 %740
    %v742 = vsel %vm729, %v725, -inf
    %743 = vmax.xlane.f32.xlu0 %v742
    %v744 = vpop.xlane.xlu0 %743
    %v745 = vsel %vm729, %v726, -inf
    %746 = vmax.xlane.f32.xlu0 %v745
    %v747 = vpop.xlane.xlu0 %746
    %v748 = vsel %vm729, %v727, -inf
    %749 = vmax.xlane.f32.xlu0 %v748
    %v750 = vpop.xlane.xlu0 %749
    %v751 = vsel %vm729, %v728, -inf
    %752 = vmax.xlane.f32.xlu0 %v751
    %v753 = vpop.xlane.xlu0 %752
    %v754 = vsub.f32 %v721, %v732
    %v755 = vsub.f32 %v722, %v735
    %v756 = vsub.f32 %v723, %v738
    %v757 = vsub.f32 %v724, %v741
    %v758 = vsub.f32 %v725, %v744
    %v759 = vsub.f32 %v726, %v747
    %v760 = vsub.f32 %v727, %v750
    %v761 = vsub.f32 %v728, %v753
    %v762 = vmul.f32 %v754, 1.442695
    %v763 = vpow.pop %v762
    %v764 = vmul.f32 %v755, 1.442695
    %v765 = vpow.pop %v764
    %v766 = vmul.f32 %v756, 1.442695
    %v767 = vpow.pop %v766
    %v768 = vmul.f32 %v757, 1.442695
    %v769 = vpow.pop %v768
    %v770 = vmul.f32 %v758, 1.442695
    %v771 = vpow.pop %v770
    %v772 = vmul.f32 %v759, 1.442695
    %v773 = vpow.pop %v772
    %v774 = vmul.f32 %v760, 1.442695
    %v775 = vpow.pop %v774
    %v776 = vmul.f32 %v761, 1.442695
    %v777 = vpow.pop %v776
    %v778 = vsel %vm729, %v763, 0.0
    %779 = vadd.xlane.f32.xlu0 %v778
    %v780 = vpop.xlane.xlu0 %779
    %v781 = vsel %vm729, %v765, 0.0
    %782 = vadd.xlane.f32.xlu0 %v781
    %v783 = vpop.xlane.xlu0 %782
    %v784 = vsel %vm729, %v767, 0.0
    %785 = vadd.xlane.f32.xlu0 %v784
    %v786 = vpop.xlane.xlu0 %785
    %v787 = vsel %vm729, %v769, 0.0
    %788 = vadd.xlane.f32.xlu0 %v787
    %v789 = vpop.xlane.xlu0 %788
    %v790 = vsel %vm729, %v771, 0.0
    %791 = vadd.xlane.f32.xlu0 %v790
    %v792 = vpop.xlane.xlu0 %791
    %v793 = vsel %vm729, %v773, 0.0
    %794 = vadd.xlane.f32.xlu0 %v793
    %v795 = vpop.xlane.xlu0 %794
    %v796 = vsel %vm729, %v775, 0.0
    %797 = vadd.xlane.f32.xlu0 %v796
    %v798 = vpop.xlane.xlu0 %797
    %v799 = vsel %vm729, %v777, 0.0
    %800 = vadd.xlane.f32.xlu0 %v799
    %v801 = vpop.xlane.xlu0 %800
    %v802 = vrcp.pop %v780
    %v803 = vrcp.pop %v783
    %v804 = vrcp.pop %v786
    %v805 = vrcp.pop %v789
    %v806 = vrcp.pop %v792
    %v807 = vrcp.pop %v795
    %v808 = vrcp.pop %v798
    %v809 = vrcp.pop %v801
    %v810 = vmul.f32 %v763, %v802
    %v811 = vmul.f32 %v765, %v803
    %v812 = vmul.f32 %v767, %v804
    %v813 = vmul.f32 %v769, %v805
    %v814 = vmul.f32 %v771, %v806
    %v815 = vmul.f32 %v773, %v807
    %v816 = vmul.f32 %v775, %v808
    %v817 = vmul.f32 %v777, %v809
    %818 = vst.msk [vmem:[#allocation7] sm:$0xff] %vm729, %v810
    %819 = vst.msk [vmem:[#allocation7 + $0x8] sm:$0xff] %vm729, %v811
    %820 = vst.msk [vmem:[#allocation7 + $0x10] sm:$0xff] %vm729, %v812
    %821 = vst.msk [vmem:[#allocation7 + $0x18] sm:$0xff] %vm729, %v813
    %822 = vst.msk [vmem:[#allocation7 + $0x20] sm:$0xff] %vm729, %v814
    %823 = vst.msk [vmem:[#allocation7 + $0x28] sm:$0xff] %vm729, %v815
    %824 = vst.msk [vmem:[#allocation7 + $0x30] sm:$0xff] %vm729, %v816
    %825 = vst.msk [vmem:[#allocation7 + $0x38] sm:$0xff] %vm729, %v817
    // Predicated region
    $region18: #{tpu_custom_call.1} parent=1 // pred_check
      _
    $region19: #{tpu_custom_call.1} parent=1 // pred_check_branch
      %827 = sbr.rel (0) target = $region21
    $region20: #{tpu_custom_call.1} parent=1 // pred_region
      %s829 = ssub.s32 1024, 1024
      %830 = vsyncadd [#allocation4], %s829
      %s831 = sshll.u32 [#allocation7], 4
      %s832 = int_to_ptr.vmem [resolvable:$true] %s831
      %837 = dma.vmem_to_hbm [thread:$0]  %s832, 1024, %s2, [#allocation4], 128, 128, 8
    $region21: #{tpu_custom_call.1} parent=1 // pred_fallthru
      _
    // Predicated region
    $region22: #{tpu_custom_call.1} parent=1 // pred_check
      _
    $region23: #{tpu_custom_call.1} parent=1 // pred_check_branch
      %839 = sbr.rel (0) target = $region25
    $region24: #{tpu_custom_call.1} parent=1 // pred_region
      %840 = dma.done [#allocation4], 1024
    $region25: #{tpu_custom_call.1} parent=1 // pred_fallthru
      _
    %841 = vsyncpa [#allocation3], 1
    %842 = vsyncpa [#allocation6], 1
    %843 = vsyncpa [#allocation4], 1

</llo_original>
